<compile_context>
chip_gen: v5e
topology: v5e:2x2
jax: 0.10.0
libtpu: 0.0.40
codegen_flags: <defaults>
</compile_context>

<pallas_src>
import functools

import jax
import jax.numpy as jnp
from jax.experimental import pallas as pl
from jax.experimental.pallas import tpu as pltpu

LANES = 128        # TPU vreg lane width
EPI_ROWS = 8       # sublane-padded rows of the per-channel epilogue table
TM_MAX = 4608      # row-tile cap (~4.3 MB double-buffered VMEM at K<=256)
LRELU_SLOPE = 0.2  # matches LeakyReLU(0.2) in the module


def _round_up(x, m):
    return ((x + m - 1) // m) * m


@functools.lru_cache(maxsize=None)
def _dual_tensorcore():
    """True when one Pallas program spans two TensorCores (v4/v5p megacore, v7x);
    False for single-TC chips (v2/v3/v5e/v6e).  Unknown kinds default to True
    (an even grid split is harmless on a single core)."""
    try:
        kind = jax.devices()[0].device_kind.lower()
    except Exception:
        return True
    for tag in ("lite", "v5e", "v6e", "v2", "v3"):
        if tag in kind:
            return False
    return True


def _grid_plan(m):
    """(n_steps, tm) for an (M, K) @ (K, 128) matmul.
    Dual-TC chips always get an EVEN step count (exact megacore split); single-TC
    chips get the fewest steps (grid=1 for small M) with tiles capped at TM_MAX."""
    step = 2 if _dual_tensorcore() else 1
    n = step
    while _round_up(pl.cdiv(m, n), 16) > TM_MAX:
        n += step
    return n, _round_up(pl.cdiv(m, n), 16)


def _fold_bn(b, bn):
    """Fold conv bias + (inference-mode) BatchNorm into (per-Cout weight scale, shift)."""
    b = b.astype(jnp.float32)
    if bn is None:
        return jnp.ones_like(b), b
    gamma, beta, mean, var = (t.astype(jnp.float32) for t in bn)
    scale = gamma * jax.lax.rsqrt(var + 1e-5)
    shift = (b - mean) * scale + beta
    return scale, shift


def _epilogue_table(shift, slope, cp):
    epi = jnp.zeros((EPI_ROWS, cp), jnp.float32)
    epi = epi.at[0, : shift.shape[0]].set(shift)
    epi = epi.at[1, : slope.shape[0]].set(slope)
    return epi


# ----------------------------------------------------------------------------
# Kernel 1: im2col matmul + fused (shift, per-channel LeakyReLU)  [stride-2 layers]
# ----------------------------------------------------------------------------
def _mm_epi_kernel(p_ref, w_ref, e_ref, o_ref):
    acc = jnp.dot(p_ref[...], w_ref[...], preferred_element_type=jnp.float32)
    acc = acc + e_ref[0:1, :]                                   # bias + BN shift
    o_ref[...] = jnp.where(acc >= 0.0, acc, e_ref[1:2, :] * acc).astype(o_ref.dtype)


def _matmul_epilogue(patches, w_mat, shift, slope, out_dtype):
    """(M, K) bf16 @ (K, Cp) bf16 with fused shift + per-channel LeakyReLU."""
    m, k = patches.shape
    cp = w_mat.shape[1]
    n_steps, tm = _grid_plan(m)
    m_pad = n_steps * tm
    if m_pad != m:
        patches = jnp.pad(patches, ((0, m_pad - m), (0, 0)))
    epi = _epilogue_table(shift, slope, cp)

    out = pl.pallas_call(
        _mm_epi_kernel,
        out_shape=jax.ShapeDtypeStruct((m_pad, cp), out_dtype),
        grid=(n_steps,),
        in_specs=[
            pl.BlockSpec((tm, k), lambda i: (i, 0)),
            pl.BlockSpec((k, cp), lambda i: (0, 0)),
            pl.BlockSpec((EPI_ROWS, cp), lambda i: (0, 0)),
        ],
        out_specs=pl.BlockSpec((tm, cp), lambda i: (i, 0)),
        compiler_params=pltpu.CompilerParams(dimension_semantics=("parallel",)),
    )(patches, w_mat, epi)
    return out[:m]


def conv2d_s2(x_nhwc, w, b, *, bn=None, lrelu=False, out_dtype=jnp.bfloat16):
    """4x4 / stride-2 / pad-2 conv: one XLA im2col gather + one Pallas MXU matmul."""
    kh, kw, cin, cout = w.shape
    n, _, _, c = x_nhwc.shape
    assert c == cin and (kh, kw) == (4, 4)
    cin_p = _round_up(max(cin, 8), 8)            # K = 16 * cin_p is a multiple of 128

    xb = x_nhwc.astype(jnp.bfloat16)
    if cin_p != cin:
        xb = jnp.pad(xb, ((0, 0), (0, 0), (0, 0), (0, cin_p - cin)))

    # Single XLA gather; output feature order is channel-major (ci, kh, kw).
    patches = jax.lax.conv_general_dilated_patches(
        xb, (kh, kw), (2, 2), padding=((2, 2), (2, 2)),
        dimension_numbers=("NHWC", "HWIO", "NHWC"))
    _, ho, wo, k = patches.shape
    patches = patches.reshape(n * ho * wo, k)

    scale, shift = _fold_bn(b, bn)
    w_eff = jnp.transpose(w.astype(jnp.float32) * scale, (2, 0, 1, 3))  # (ci,kh,kw,co)
    if cin_p != cin:
        w_eff = jnp.pad(w_eff, ((0, cin_p - cin), (0, 0), (0, 0), (0, 0)))
    cp = _round_up(cout, LANES)
    w_mat = jnp.pad(w_eff.reshape(cin_p * kh * kw, cout),
                    ((0, 0), (0, cp - cout))).astype(jnp.bfloat16)
    slope = jnp.full((cout,), LRELU_SLOPE if lrelu else 1.0, jnp.float32)

    out = _matmul_epilogue(patches, w_mat, shift, slope, out_dtype)
    return out[:, :cout].reshape(n, ho, wo, cout)


# ----------------------------------------------------------------------------
# Kernel 2: implicit-GEMM 4x4 stride-1 conv (flat-spatial shift trick)
# ----------------------------------------------------------------------------
def _conv_s1_kernel(x_ref, w_ref, e_ref, o_ref, acc_ref, *, wp, ksize):
    """out_flat[q] = sum_{kh,kw} x_flat[q + kh*Wp + kw] @ w[kh,kw], computed over the
    full padded width Wp (the wrapper slices the valid columns afterwards)."""
    kh_n, kw_n = ksize
    mo = acc_ref.shape[0]
    acc_ref[...] = jnp.zeros_like(acc_ref)
    for kh in range(kh_n):
        for kw in range(kw_n):
            off = kh * wp + kw
            acc_ref[...] += jnp.dot(x_ref[off:off + mo, :],
                                    w_ref[kh * kw_n + kw, :, :],
                                    preferred_element_type=jnp.float32)
    r = acc_ref[...] + e_ref[0:1, :]
    o_ref[...] = jnp.where(r >= 0.0, r, e_ref[1:2, :] * r).astype(o_ref.dtype)


def conv2d_s1_heads(x_nhwc, heads, *, out_dtype=jnp.bfloat16):
    """One or more 4x4 / stride-1 / pad-2 conv heads sharing the same input, computed
    by a single implicit-GEMM Pallas kernel (NO im2col patch materialization).  Heads
    are packed along Cout; BN scale is folded into the weights; bias/BN shift and the
    per-channel LeakyReLU slope run in the fused epilogue."""
    kh = kw = 4
    pad = 2
    n, h, w_sp, cin = x_nhwc.shape
    cin_p = _round_up(max(cin, 8), 8)
    hp, wp = h + 2 * pad, w_sp + 2 * pad
    ho, wo = h + 1, w_sp + 1
    mo = ho * wp                                   # over-computed: full padded width
    mo_r = _round_up(mo, 8)
    mx = _round_up(max(hp * wp, (kh - 1) * wp + (kw - 1) + mo_r), 8)

    xb = jnp.pad(x_nhwc.astype(jnp.bfloat16),
                 ((0, 0), (pad, pad), (pad, pad), (0, cin_p - cin)))
    xf = xb.reshape(n, hp * wp, cin_p)
    xf = jnp.pad(xf, ((0, 0), (0, mx - hp * wp), (0, 0)))       # keep shifted reads in-bounds

    w_slabs, shifts, slopes, couts = [], [], [], []
    for head in heads:
        wgt, b, bn, lrelu = head["w"], head["b"], head["bn"], head["lrelu"]
        assert wgt.shape[:3] == (kh, kw, cin)
        cout = wgt.shape[-1]
        scale, shift = _fold_bn(b, bn)
        w_eff = jnp.pad(wgt.astype(jnp.float32) * scale,
                        ((0, 0), (0, 0), (0, cin_p - cin), (0, 0)))
        w_slabs.append(w_eff)
        shifts.append(shift)
        slopes.append(jnp.full((cout,), LRELU_SLOPE if lrelu else 1.0, jnp.float32))
        couts.append(cout)
    cout_t = sum(couts)
    cp = _round_up(cout_t, LANES)
    w_all = jnp.pad(jnp.concatenate(w_slabs, axis=-1),
                    ((0, 0), (0, 0), (0, 0), (0, cp - cout_t)))
    w_all = w_all.reshape(kh * kw, cin_p, cp).astype(jnp.bfloat16)
    epi = _epilogue_table(jnp.concatenate(shifts), jnp.concatenate(slopes), cp)

    kernel = functools.partial(_conv_s1_kernel, wp=wp, ksize=(kh, kw))
    out = pl.pallas_call(
        kernel,
        out_shape=jax.ShapeDtypeStruct((n, mo_r, cp), out_dtype),
        grid=(n,),                                               # batch grid (even on v7x)
        in_specs=[
            pl.BlockSpec((None, mx, cin_p), lambda i: (i, 0, 0)),
            pl.BlockSpec((kh * kw, cin_p, cp), lambda i: (0, 0, 0)),
            pl.BlockSpec((EPI_ROWS, cp), lambda i: (0, 0)),
        ],
        out_specs=pl.BlockSpec((None, mo_r, cp), lambda i: (i, 0, 0)),
        scratch_shapes=[pltpu.VMEM((mo_r, cp), jnp.float32)],
        compiler_params=pltpu.CompilerParams(dimension_semantics=("parallel",)),
    )(xf, w_all, epi)

    out = out[:, :mo, :].reshape(n, ho, wp, cp)[:, :, :wo, :]
    results, off = [], 0
    for c in couts:
        results.append(out[..., off:off + c])
        off += c
    return results


# ----------------------------------------------------------------------------
# Parameters (deterministic init; shapes follow Discriminator.__init__)
# ----------------------------------------------------------------------------
def init_params(key, in_channels, ndf=32, num_domains=2):
    ks = 4

    def conv_w(k, cin, cout):
        return 0.05 * jax.random.normal(k, (ks, ks, cin, cout), jnp.float32)

    def conv_b(k, cout):
        return 0.02 * jax.random.normal(k, (cout,), jnp.float32)

    def bn(k, c):
        k1, k2, k3, k4 = jax.random.split(k, 4)
        gamma = 1.0 + 0.1 * jax.random.normal(k1, (c,), jnp.float32)
        beta = 0.1 * jax.random.normal(k2, (c,), jnp.float32)
        mean = 0.1 * jax.random.normal(k3, (c,), jnp.float32)
        var = 0.5 + jax.random.uniform(k4, (c,), jnp.float32)
        return (gamma, beta, mean, var)

    keys = jax.random.split(key, 16)
    p = {}
    # model: Conv(in->ndf) LReLU | Conv(ndf->2ndf) BN LReLU | Conv(2ndf->4ndf) BN LReLU
    p["c1_w"], p["c1_b"] = conv_w(keys[0], in_channels, ndf), conv_b(keys[1], ndf)
    p["c2_w"], p["c2_b"] = conv_w(keys[2], ndf, ndf * 2), conv_b(keys[3], ndf * 2)
    p["bn2"] = bn(keys[4], ndf * 2)
    p["c3_w"], p["c3_b"] = conv_w(keys[5], ndf * 2, ndf * 4), conv_b(keys[6], ndf * 4)
    p["bn3"] = bn(keys[7], ndf * 4)
    # out1: Conv(4ndf -> 1), stride 1
    p["o1_w"], p["o1_b"] = conv_w(keys[8], ndf * 4, 1), conv_b(keys[9], 1)
    # out2: Conv(4ndf -> 4ndf) BN LReLU Conv(4ndf -> 1), stride 1
    p["o2a_w"], p["o2a_b"] = conv_w(keys[10], ndf * 4, ndf * 4), conv_b(keys[11], ndf * 4)
    p["bn_o2"] = bn(keys[12], ndf * 4)
    p["o2b_w"], p["o2b_b"] = conv_w(keys[13], ndf * 4, 1), conv_b(keys[14], 1)
    # aux: Linear(19*19 -> num_domains) + Softmax
    kaw, kab = jax.random.split(keys[15])
    p["aux_w"] = 0.05 * jax.random.normal(kaw, (19 * 19, num_domains), jnp.float32)
    p["aux_b"] = 0.02 * jax.random.normal(kab, (num_domains,), jnp.float32)
    return p


# ----------------------------------------------------------------------------
# Forward (matches Discriminator.forward, multilayer flag included)
# ----------------------------------------------------------------------------
def discriminator_forward(params, x_nchw, multilayer=False):
    x = jnp.transpose(x_nchw, (0, 2, 3, 1)).astype(jnp.float32)   # NCHW -> NHWC

    # self.model  (intermediate activations kept in bf16; matmuls accumulate in f32)
    y = conv2d_s2(x, params["c1_w"], params["c1_b"], lrelu=True)
    y = conv2d_s2(y, params["c2_w"], params["c2_b"], bn=params["bn2"], lrelu=True)
    y = conv2d_s2(y, params["c3_w"], params["c3_b"], bn=params["bn3"], lrelu=True)

    # out1 (multilayer only) and out2[0] share input/kernel/stride/padding -> packed
    # along Cout into ONE implicit-GEMM kernel call and split afterwards.
    heads = []
    if multilayer:
        heads.append(dict(w=params["o1_w"], b=params["o1_b"], bn=None, lrelu=False))
    heads.append(dict(w=params["o2a_w"], b=params["o2a_b"], bn=params["bn_o2"], lrelu=True))
    outs = conv2d_s1_heads(y, heads)
    o1 = outs[0] if multilayer else None
    o = outs[-1]                                                   # (N, 18, 18, 4*ndf)

    (o,) = conv2d_s1_heads(
        o, [dict(w=params["o2b_w"], b=params["o2b_b"], bn=None, lrelu=False)])
    o = o.astype(jnp.float32)                                      # (N, 19, 19, 1)

    n = o.shape[0]
    out3 = o.reshape(-1)                 # == NCHW flatten because the head has C == 1
    label_in = o.reshape(n, -1)          # (N, 361)

    # aux head: tiny (N x 361) @ (361 x D) + softmax -> plain jnp, XLA fuses it.
    logits = label_in @ params["aux_w"] + params["aux_b"]
    label = jax.nn.softmax(logits, axis=-1)

    if multilayer:
        return jnp.concatenate([o1.astype(jnp.float32).reshape(-1), out3], axis=0), label
    return out3, label


# ----------------------------------------------------------------------------
# Reference conv (same bf16 operand rounding as the kernels) for self-checks
# ----------------------------------------------------------------------------
def _ref_conv(x, w, b, *, stride, pad, bn, lrelu):
    scale, shift = _fold_bn(b, bn)
    xb = x.astype(jnp.bfloat16).astype(jnp.float32)
    wb = (w.astype(jnp.float32) * scale).astype(jnp.bfloat16).astype(jnp.float32)
    y = jax.lax.conv_general_dilated(
        xb, wb, (stride, stride), ((pad, pad), (pad, pad)),
        dimension_numbers=("NHWC", "HWIO", "NHWC"),
        precision=jax.lax.Precision.HIGHEST)
    y = y + shift
    return jnp.where(y >= 0.0, y, LRELU_SLOPE * y) if lrelu else y


# ----------------------------------------------------------------------------
if __name__ == "__main__":
    # Spatial size 128 is implied by Linear(in_features=19*19) in the module.
    in_channels, ndf, num_domains = 3, 8, 2
    batch = 2

    key = jax.random.PRNGKey(0)
    k_param, k_data, k1, k2, k3, k4, k5, k6 = jax.random.split(key, 8)
    params = init_params(k_param, in_channels, ndf=ndf, num_domains=num_domains)
    x = jax.random.normal(k_data, (batch, in_channels, 128, 128), jnp.float32)

    # One-off numeric checks of both conv kernels against lax.conv_general_dilated
    # (guards the im2col feature ordering and the implicit-GEMM shift-trick indexing).
    xs2 = jax.random.normal(k1, (2, 11, 11, 6), jnp.float32)
    ws2 = 0.05 * jax.random.normal(k2, (4, 4, 6, 7), jnp.float32)
    bs2 = 0.02 * jax.random.normal(k3, (7,), jnp.float32)
    got2 = conv2d_s2(xs2, ws2, bs2, lrelu=True).astype(jnp.float32)
    want2 = _ref_conv(xs2, ws2, bs2, stride=2, pad=2, bn=None, lrelu=True)
    assert got2.shape == want2.shape
    assert bool(jnp.allclose(got2, want2, atol=5e-2, rtol=5e-2)), "stride-2 conv mismatch"

    xs1 = jax.random.normal(k4, (2, 9, 9, 16), jnp.float32)
    ws1 = 0.05 * jax.random.normal(k5, (4, 4, 16, 5), jnp.float32)
    bs1 = 0.02 * jax.random.normal(k6, (5,), jnp.float32)
    (got1,) = conv2d_s1_heads(xs1, [dict(w=ws1, b=bs1, bn=None, lrelu=True)])
    got1 = got1.astype(jnp.float32)
    want1 = _ref_conv(xs1, ws1, bs1, stride=1, pad=2, bn=None, lrelu=True)
    assert got1.shape == want1.shape
    assert bool(jnp.allclose(got1, want1, atol=5e-2, rtol=5e-2)), "stride-1 conv mismatch"

    fwd = jax.jit(functools.partial(discriminator_forward, multilayer=False))
    out3, label = fwd(params, x)
    jax.block_until_ready((out3, label))

    assert out3.shape == (batch * 19 * 19,)
    assert label.shape == (batch, num_domains)
    assert bool(jnp.all(jnp.isfinite(out3))) and bool(jnp.all(jnp.isfinite(label)))
    assert bool(jnp.allclose(jnp.sum(label, axis=-1), 1.0, atol=1e-5))

    # exercise the multilayer=True path (fused o1/o2a head) as well
    fwd_ml = jax.jit(functools.partial(discriminator_forward, multilayer=True))
    out_ml, label_ml = fwd_ml(params, x)
    jax.block_until_ready((out_ml, label_ml))
    assert out_ml.shape == (batch * 18 * 18 + batch * 19 * 19,)
    assert bool(jnp.all(jnp.isfinite(out_ml)))

    print("KERNEL_OK")
</pallas_src>

<mosaic_0001>
module attributes {stable_mosaic.version = 11 : i64} {
  func.func @_mm_epi_kernel(%arg0: i32, %arg1: memref<48x128xbf16, #tpu.memory_space<vmem>>, %arg2: memref<128x128xbf16, #tpu.memory_space<vmem>>, %arg3: memref<8x128xf32, #tpu.memory_space<vmem>>, %arg4: memref<48x128xbf16, #tpu.memory_space<vmem>>) attributes {dimension_semantics = [#tpu.dimension_semantics<parallel>], iteration_bounds = array<i64: 2>, scalar_prefetch = 0 : i64, scratch_operands = 0 : i64, tpu.core_type = #tpu.core_type<tc>, window_params = [{transform_indices = @transform_0, window_bounds = array<i64: 48, 128>}, {pipeline_mode = #tpu.pipeline_mode<synchronous>, transform_indices = @transform_1, window_bounds = array<i64: 128, 128>}, {pipeline_mode = #tpu.pipeline_mode<synchronous>, transform_indices = @transform_2, window_bounds = array<i64: 8, 128>}, {transform_indices = @transform_3, window_bounds = array<i64: 48, 128>}]} {
    %c0 = arith.constant 0 : index
    %c0_0 = arith.constant 0 : index
    %0 = vector.load %arg1[%c0, %c0_0] : memref<48x128xbf16, #tpu.memory_space<vmem>>, vector<48x128xbf16>
    %c0_1 = arith.constant 0 : index
    %c0_2 = arith.constant 0 : index
    %1 = vector.load %arg2[%c0_1, %c0_2] : memref<128x128xbf16, #tpu.memory_space<vmem>>, vector<128x128xbf16>
    %cst = arith.constant dense<0.000000e+00> : vector<48x128xf32>
    %2 = tpu.matmul %0, %1, %cst {dimension_numbers = #tpu.dot_dimension_numbers<[1], [0], [0], [1], [0, 0, 1, 1], [], []>} : vector<48x128xbf16>, vector<128x128xbf16>, vector<48x128xf32> -> vector<48x128xf32>
    %c0_3 = arith.constant 0 : index
    %c0_4 = arith.constant 0 : index
    %3 = vector.load %arg3[%c0_3, %c0_4] : memref<8x128xf32, #tpu.memory_space<vmem>>, vector<1x128xf32>
    %4 = vector.broadcast %3 : vector<1x128xf32> to vector<48x128xf32>
    %5 = arith.addf %2, %4 : vector<48x128xf32>
    %cst_5 = arith.constant 0.000000e+00 : f32
    %6 = vector.broadcast %cst_5 : f32 to vector<48x128xf32>
    %7 = arith.cmpf oge, %5, %6 : vector<48x128xf32>
    %c1 = arith.constant 1 : index
    %c0_6 = arith.constant 0 : index
    %8 = vector.load %arg3[%c1, %c0_6] : memref<8x128xf32, #tpu.memory_space<vmem>>, vector<1x128xf32>
    %9 = vector.broadcast %8 : vector<1x128xf32> to vector<48x128xf32>
    %10 = arith.mulf %9, %5 : vector<48x128xf32>
    %11 = arith.select %7, %5, %10 : vector<48x128xi1>, vector<48x128xf32>
    %12 = arith.truncf %11 : vector<48x128xf32> to vector<48x128xbf16>
    %c0_7 = arith.constant 0 : index
    %c0_8 = arith.constant 0 : index
    %13 = vector.load %arg4[%c0_7, %c0_8] : memref<48x128xbf16, #tpu.memory_space<vmem>>, vector<48x128xbf16>
    tpu.vector_store %arg4[%c0_7, %c0_8], %12 {strides = array<i32>} : memref<48x128xbf16, #tpu.memory_space<vmem>>, vector<48x128xbf16>,
    return
  }
  func.func @transform_0(%arg0: i32) -> (i32, i32) {
    %c0_i32 = arith.constant 0 : i32
    %c0_i32_0 = arith.constant 0 : i32
    return %arg0, %c0_i32 : i32, i32
  }
  func.func @transform_1(%arg0: i32) -> (i32, i32) {
    %c0_i32 = arith.constant 0 : i32
    %c0_i32_0 = arith.constant 0 : i32
    %c0_i32_1 = arith.constant 0 : i32
    return %c0_i32, %c0_i32_0 : i32, i32
  }
  func.func @transform_2(%arg0: i32) -> (i32, i32) {
    %c0_i32 = arith.constant 0 : i32
    %c0_i32_0 = arith.constant 0 : i32
    %c0_i32_1 = arith.constant 0 : i32
    return %c0_i32, %c0_i32_0 : i32, i32
  }
  func.func @transform_3(%arg0: i32) -> (i32, i32) {
    %c0_i32 = arith.constant 0 : i32
    %c0_i32_0 = arith.constant 0 : i32
    return %arg0, %c0_i32 : i32, i32
  }
}

</mosaic_0001>

<llo_original>
// kernel: tpu_custom_call.1
$region0: #{tpu_custom_call.1}
  #allocation0 [shape = 'u32[]', space=smem, size = 0x4, offset = 0x4, fixed_abs, tag = 'smem constant byte address 0x4 - core index']
  #allocation1 [shape = 'u32[72,128]{1,0:T(1,128)}', space=vmem, size = 0x9000, scoped, tag = 'internal scratch']
  %s0 = inlined_call_operand.hbm [shape: bf16[96,128], index: 0, kind: input, shape index: {}]
  %s1 = inlined_call_operand.hbm [shape: bf16[128,128], index: 1, kind: input, shape index: {}]
  %s2 = inlined_call_operand.hbm [shape: f32[8,128], index: 2, kind: input, shape index: {}]
  %s3 = inlined_call_operand.hbm [shape: bf16[96,128], index: 3, kind: output, shape index: {}]
  %s4 = sld [smem:[#allocation0]]
  $region57: #{tpu_custom_call.1} parent=0
    _
  %s6 = ssub.s32 1, %s4
  %s7 = scalar_select 0, %s6, %s4
  $region1: #{tpu_custom_call.1} parent=0
    #allocation2 [shape = 'u8[24576]{0}', space=vmem, size = 0x6000, scoped, tag = 'input window, operand 0']
    #allocation3 [shape = 's32[2]{0}', space=sflag, size = 0x8, scoped, tag = 'scoped memory for tpu_custom_call.1']
    #allocation4 [shape = 's32[2]{0}', space=sflag, size = 0x8, scoped, tag = 'scoped memory for tpu_custom_call.1']
    #allocation5 [shape = 'u8[32768]{0}', space=vmem, size = 0x8000, scoped, tag = 'input window, operand 1, single buffered']
    #allocation6 [shape = 's32[1]{0}', space=sflag, size = 0x4, scoped, tag = 'scoped memory for tpu_custom_call.1']
    #allocation7 [shape = 'u8[4096]{0}', space=vmem, size = 0x1000, scoped, tag = 'input window, operand 2, single buffered']
    #allocation8 [shape = 'u8[24576]{0}', space=vmem, size = 0x6000, scoped, tag = 'output window, operand 0']
    %8 = vsyncpa [#allocation3], 0
    %s9 = scalar_lea.sflag [#allocation3], 1
    %10 = vsyncpa %s9, 0
    %11 = vsyncpa [#allocation6], 0
    %12 = vsyncpa [#allocation4], 0
    %s13 = scalar_lea.sflag [#allocation4], 1
    %14 = vsyncpa %s13, 0
    loop: start=0, step=1, limit=4
    $region2: #{tpu_custom_call.1} parent=1 // loop_pre_header
      _
    $region3: #{tpu_custom_call.1} parent=1 // loop_header
      %s16 = sphi 0, %s20
      %p17 = scmp.ge.s32.totalorder %s16, 4
      %s26 = sphi 0, %s28
      %s29 = sphi 0, %s26
      %s30 = sphi 0, %s29
      %s46 = sphi 0, %s30
      %s50 = sphi 0, %s50
      %s52 = sphi 0, %s50
      %s53 = sphi 0, %s52
      %s67 = sphi 0, %s53
      %s71 = sphi 0, %s71
      %s73 = sphi 0, %s71
      %s74 = sphi 0, %s73
      %s88 = sphi 0, %s74
      %s94 = sphi 0, %s96
      %s97 = sphi 0, %s94
      %s98 = sphi 0, %s97
      %s114 = sphi 0, %s98
    $region4: #{tpu_custom_call.1} parent=1 // loop_header_branch
      %19 = sbr.rel (%p17) target = $region8
    $region5: #{tpu_custom_call.1} parent=1 // loop_body
      %s21 = ssub.s32 %s16, 1
      %s22 = ssub.s32 %s16, 2
      %s23 = sadd.s32 %s16, 1
      %s24 = ssub.s32 %s16, %s23
      %p25 = scmp.eq.s32.totalorder %s24, 0
      %s27 = sadd.s32 %s26, 1
      %s28 = scalar_select %p25, %s26, %s27
      %p31 = pneg %p25
      %p32 = scmp.eq.s32.totalorder %s16, 1
      %p33 = por %p31, %p32
      %p34 = scmp.ne.s32.totalorder %s26, %s29
      %p35 = scmp.eq.s32.totalorder %s16, 0
      %p36 = por %p34, %p35
      %p37 = scmp.ne.s32.totalorder %s26, %s29
      %p38 = scmp.eq.s32.totalorder %s21, 1
      %p39 = por %p37, %p38
      %p40 = scmp.ne.s32.totalorder %s29, %s30
      %p41 = scmp.eq.s32.totalorder %s21, 0
      %p42 = por %p40, %p41
      %p43 = scmp.ne.s32.totalorder %s29, %s30
      %p44 = scmp.eq.s32.totalorder %s22, 1
      %p45 = por %p43, %p44
      %p47 = scmp.ne.s32.totalorder %s30, %s46
      %p48 = scmp.eq.s32.totalorder %s22, 0
      %p49 = por %p47, %p48
      %s51 = sadd.s32 %s50, 1
      %p54 = scmp.eq.s32.totalorder %s16, 1
      %p55 = scmp.ne.s32.totalorder %s50, %s52
      %p56 = scmp.eq.s32.totalorder %s16, 0
      %p57 = por %p55, %p56
      %p58 = scmp.ne.s32.totalorder %s50, %s52
      %p59 = scmp.eq.s32.totalorder %s21, 1
      %p60 = por %p58, %p59
      %p61 = scmp.ne.s32.totalorder %s52, %s53
      %p62 = scmp.eq.s32.totalorder %s21, 0
      %p63 = por %p61, %p62
      %p64 = scmp.ne.s32.totalorder %s52, %s53
      %p65 = scmp.eq.s32.totalorder %s22, 1
      %p66 = por %p64, %p65
      %p68 = scmp.ne.s32.totalorder %s53, %s67
      %p69 = scmp.eq.s32.totalorder %s22, 0
      %p70 = por %p68, %p69
      %s72 = sadd.s32 %s71, 1
      %p75 = scmp.eq.s32.totalorder %s16, 1
      %p76 = scmp.ne.s32.totalorder %s71, %s73
      %p77 = scmp.eq.s32.totalorder %s16, 0
      %p78 = por %p76, %p77
      %p79 = scmp.ne.s32.totalorder %s71, %s73
      %p80 = scmp.eq.s32.totalorder %s21, 1
      %p81 = por %p79, %p80
      %p82 = scmp.ne.s32.totalorder %s73, %s74
      %p83 = scmp.eq.s32.totalorder %s21, 0
      %p84 = por %p82, %p83
      %p85 = scmp.ne.s32.totalorder %s73, %s74
      %p86 = scmp.eq.s32.totalorder %s22, 1
      %p87 = por %p85, %p86
      %p89 = scmp.ne.s32.totalorder %s74, %s88
      %p90 = scmp.eq.s32.totalorder %s22, 0
      %p91 = por %p89, %p90
      %s92 = ssub.s32 %s16, %s23
      %p93 = scmp.eq.s32.totalorder %s92, 0
      %s95 = sadd.s32 %s94, 1
      %s96 = scalar_select %p93, %s94, %s95
      %p99 = pneg %p93
      %p100 = scmp.eq.s32.totalorder %s16, 1
      %p101 = por %p99, %p100
      %p102 = scmp.ne.s32.totalorder %s94, %s97
      %p103 = scmp.eq.s32.totalorder %s16, 0
      %p104 = por %p102, %p103
      %p105 = scmp.ne.s32.totalorder %s94, %s97
      %p106 = scmp.eq.s32.totalorder %s21, 1
      %p107 = por %p105, %p106
      %p108 = scmp.ne.s32.totalorder %s97, %s98
      %p109 = scmp.eq.s32.totalorder %s21, 0
      %p110 = por %p108, %p109
      %p111 = scmp.ne.s32.totalorder %s97, %s98
      %p112 = scmp.eq.s32.totalorder %s22, 1
      %p113 = por %p111, %p112
      %p115 = scmp.ne.s32.totalorder %s98, %s114
      %p116 = scmp.eq.s32.totalorder %s22, 0
      %p117 = por %p115, %p116
      %p118 = scmp.le.s32.totalorder 1, %s16
      %p119 = scmp.lt.s32.totalorder %s16, 3
      %p120 = pnand %p118, %p119
      %p121 = pneg %p120
      // Predicated region
      $region9: #{tpu_custom_call.1} parent=5 // pred_check
        _
      $region10: #{tpu_custom_call.1} parent=5 // pred_check_branch
        %123 = sbr.rel (%p120) target = $region12
      $region11: #{tpu_custom_call.1} parent=5 // pred_region
        %s124 = ssub.s32 %s16, 1
        // Predicated region
        $region13: #{tpu_custom_call.1} parent=11 // pred_check
          %p125 = pneg %p63
        $region14: #{tpu_custom_call.1} parent=11 // pred_check_branch
          %127 = sbr.rel (%p125) target = $region16
        $region15: #{tpu_custom_call.1} parent=11 // pred_region
          %129 = vsyncadd [#allocation6], 0
          %s130 = sshll.u32 %s1, 4
          %s131 = int_to_ptr.hbm [resolvable:$true] %s130
          %s132 = sshll.u32 [#allocation5], 4
          %s133 = int_to_ptr.vmem [resolvable:$true] %s132
          %138 = dma.hbm_to_vmem [thread:$0]  %s131, 1024, %s133, [#allocation6], 64, 64, 4
        $region16: #{tpu_custom_call.1} parent=11 // pred_fallthru
          _
        // Predicated region
        $region17: #{tpu_custom_call.1} parent=11 // pred_check
          %p139 = pneg %p84
        $region18: #{tpu_custom_call.1} parent=11 // pred_check_branch
          %141 = sbr.rel (%p139) target = $region20
        $region19: #{tpu_custom_call.1} parent=11 // pred_region
          %143 = vsyncadd [#allocation6], 0
          %s145 = sshll.u32 %s2, 4
          %s146 = int_to_ptr.hbm [resolvable:$true] %s145
          %s147 = sshll.u32 [#allocation7], 4
          %s148 = int_to_ptr.vmem [resolvable:$true] %s147
          %150 = dma.hbm_to_vmem [thread:$0]  %s146, 128, %s148, [#allocation6]
        $region20: #{tpu_custom_call.1} parent=11 // pred_fallthru
          _
      $region12: #{tpu_custom_call.1} parent=5 // pred_fallthru
        _
      %p151 = scmp.lt.s32.totalorder %s16, 2
      // Predicated region
      $region21: #{tpu_custom_call.1} parent=5 // pred_check
        %p152 = pneg %p151
      $region22: #{tpu_custom_call.1} parent=5 // pred_check_branch
        %154 = sbr.rel (%p152) target = $region24
      $region23: #{tpu_custom_call.1} parent=5 // pred_region
        // Predicated region
        $region25: #{tpu_custom_call.1} parent=23 // pred_check
          %p155 = pneg %p36
        $region26: #{tpu_custom_call.1} parent=23 // pred_check_branch
          %157 = sbr.rel (%p155) target = $region28
        $region27: #{tpu_custom_call.1} parent=23 // pred_region
          %s158 = sand.u32 %s26, 1
          %s159 = scalar_lea.sflag [#allocation3], %s158
          %s160 = sand.u32 %s26, 1
          %s161 = smul.addr %s160, 24
          %s162 = scalar_lea.vmem [#allocation2], %s161
          %s163 = smul.u32 6, %s16
          %165 = vsyncadd %s159, 0
          %s166 = smul.addr %s163, 4
          %s167 = scalar_lea.hbm %s0, %s166
          %s168 = sshll.u32 %s167, 4
          %s169 = int_to_ptr.hbm [resolvable:$true] %s168
          %s170 = sshll.u32 %s162, 4
          %s171 = int_to_ptr.vmem [resolvable:$true] %s170
          %176 = dma.hbm_to_vmem [thread:$0]  %s169, 384, %s171, %s159, 64, 64, 4
        $region28: #{tpu_custom_call.1} parent=23 // pred_fallthru
          _
      $region24: #{tpu_custom_call.1} parent=5 // pred_fallthru
        _
      %p177 = scmp.le.s32.totalorder 1, %s16
      %p178 = scmp.lt.s32.totalorder %s16, 3
      %p179 = pnand %p177, %p178
      %p180 = pneg %p179
      // Predicated region
      $region29: #{tpu_custom_call.1} parent=5 // pred_check
        _
      $region30: #{tpu_custom_call.1} parent=5 // pred_check_branch
        %182 = sbr.rel (%p179) target = $region32
      $region31: #{tpu_custom_call.1} parent=5 // pred_region
        %s183 = ssub.s32 %s16, 1
        %s184 = sand.u32 %s29, 1
        %s185 = scalar_lea.sflag [#allocation3], %s184
        %s186 = sand.u32 %s29, 1
        %s187 = smul.addr %s186, 24
        %s188 = scalar_lea.vmem [#allocation2], %s187
        // Predicated region
        $region33: #{tpu_custom_call.1} parent=31 // pred_check
          %p189 = pneg %p42
        $region34: #{tpu_custom_call.1} parent=31 // pred_check_branch
          %191 = sbr.rel (%p189) target = $region36
        $region35: #{tpu_custom_call.1} parent=31 // pred_region
          %193 = dma.done %s185, 384
        $region36: #{tpu_custom_call.1} parent=31 // pred_fallthru
          _
        // Predicated region
        $region37: #{tpu_custom_call.1} parent=31 // pred_check
          %p194 = pneg %p63
        $region38: #{tpu_custom_call.1} parent=31 // pred_check_branch
          %196 = sbr.rel (%p194) target = $region40
        $region39: #{tpu_custom_call.1} parent=31 // pred_region
          %198 = dma.done [#allocation6], 1024
        $region40: #{tpu_custom_call.1} parent=31 // pred_fallthru
          _
        // Predicated region
        $region41: #{tpu_custom_call.1} parent=31 // pred_check
          %p199 = pneg %p84
        $region42: #{tpu_custom_call.1} parent=31 // pred_check_branch
          %201 = sbr.rel (%p199) target = $region44
        $region43: #{tpu_custom_call.1} parent=31 // pred_region
          %203 = dma.done [#allocation6], 128
        $region44: #{tpu_custom_call.1} parent=31 // pred_fallthru
          _
        %s204 = sand.u32 %s29, 1
        %s205 = scalar_lea.sflag [#allocation3], %s204
        %s206 = sand.u32 %s29, 1
        %s207 = smul.addr %s206, 24
        %s208 = scalar_lea.vmem [#allocation2], %s207
        %p209 = pneg %p42
        %p210 = pneg %p39
        %p211 = pneg %p63
        %p212 = pneg %p60
        %p213 = pneg %p84
        %p214 = pneg %p81
        %p215 = pneg %p110
        %p216 = pneg %p107
        %s217 = sand.u32 %s97, 1
        %s218 = scalar_lea.sflag [#allocation4], %s217
        %s219 = sand.u32 %s97, 1
        %s220 = smul.addr %s219, 24
        %s221 = scalar_lea.vmem [#allocation8], %s220
        %s222 = smul.u32 6, %s21
        %s223 = smul.u32 6, %s21
        %v224 = vld [vmem:[%s188] sm:$0xf]
        %v225 = vld [vmem:[%s188 + $0x4] sm:$0xf]
        %v226 = vld [vmem:[%s188 + $0x8] sm:$0xf]
        %v227 = vld [vmem:[%s188 + $0xc] sm:$0xf]
        %v228 = vld [vmem:[%s188 + $0x10] sm:$0xf]
        %v229 = vld [vmem:[%s188 + $0x14] sm:$0xf]
        %v230 = vld [vmem:[#allocation5] sm:$0xf]
        %v231 = vld [vmem:[#allocation5 + $0x4] sm:$0xf]
        %v232 = vld [vmem:[#allocation5 + $0x8] sm:$0xf]
        %v233 = vld [vmem:[#allocation5 + $0xc] sm:$0xf]
        %v234 = vld [vmem:[#allocation5 + $0x10] sm:$0xf]
        %v235 = vld [vmem:[#allocation5 + $0x14] sm:$0xf]
        %v236 = vld [vmem:[#allocation5 + $0x18] sm:$0xf]
        %v237 = vld [vmem:[#allocation5 + $0x1c] sm:$0xf]
        %v238 = vld [vmem:[#allocation5 + $0x20] sm:$0xf]
        %v239 = vld [vmem:[#allocation5 + $0x24] sm:$0xf]
        %v240 = vld [vmem:[#allocation5 + $0x28] sm:$0xf]
        %v241 = vld [vmem:[#allocation5 + $0x2c] sm:$0xf]
        %v242 = vld [vmem:[#allocation5 + $0x30] sm:$0xf]
        %v243 = vld [vmem:[#allocation5 + $0x34] sm:$0xf]
        %v244 = vld [vmem:[#allocation5 + $0x38] sm:$0xf]
        %v245 = vld [vmem:[#allocation5 + $0x3c] sm:$0xf]
        %v246 = vld [vmem:[#allocation7] sm:$0x1]
        %v247 = vperm.slane %v246, 0
        %v254 = vunpack.c.l.b16 %v224
        %v255 = vunpack.c.l.b16 %v225
        %v256 = vunpack.c.l.b16 %v226
        %v257 = vunpack.c.l.b16 %v227
        %v258 = vunpack.c.l.b16 %v228
        %v259 = vunpack.c.l.b16 %v229
        %v260 = vpack.c.b16 %v255, %v254
        %v261 = vpack.c.b16 %v257, %v256
        %v262 = vpack.c.b16 %v259, %v258
        %v282 = vunpack.c.l.b16 %v230
        %v283 = vunpack.c.l.b16 %v231
        %v284 = vunpack.c.l.b16 %v232
        %v285 = vunpack.c.l.b16 %v233
        %v286 = vunpack.c.l.b16 %v234
        %v287 = vunpack.c.l.b16 %v235
        %v288 = vunpack.c.l.b16 %v236
        %v289 = vunpack.c.l.b16 %v237
        %v290 = vunpack.c.l.b16 %v238
        %v291 = vunpack.c.l.b16 %v239
        %v292 = vunpack.c.l.b16 %v240
        %v293 = vunpack.c.l.b16 %v241
        %v294 = vunpack.c.l.b16 %v242
        %v295 = vunpack.c.l.b16 %v243
        %v296 = vunpack.c.l.b16 %v244
        %v297 = vunpack.c.l.b16 %v245
        %v298 = vpack.c.b16 %v283, %v282
        %v299 = vpack.c.b16 %v285, %v284
        %v300 = vpack.c.b16 %v287, %v286
        %v301 = vpack.c.b16 %v289, %v288
        %v302 = vpack.c.b16 %v291, %v290
        %v303 = vpack.c.b16 %v293, %v292
        %v304 = vpack.c.b16 %v295, %v294
        %v305 = vpack.c.b16 %v297, %v296
        %314 = vmatpush.bf16.msra.mxu0 %v305
        %315 = vmatpush.bf16.msra.mxu0 %v304
        %316 = vmatpush.bf16.msra.mxu0 %v303
        %317 = vmatpush.bf16.msra.mxu0 %v302
        %318 = vmatpush.bf16.msra.mxu0 %v301
        %319 = vmatpush.bf16.msra.mxu0 %v300
        %320 = vmatpush.bf16.msra.mxu0 %v299
        %321 = vmatpush.bf16.msra.mxu0 %v298
        %322 = vmatmul.bf16.gmra.mxu0 %v260
        %v323 = vpop.f32.mrf.mxu0
        %v324 = vadd.f32 %v247, %v323
        %v325 = vpop.f32.mrf.mxu0
        %v326 = vadd.f32 %v247, %v325
        %327 = vmatmul.bf16.gmra.mxu0 %v261
        %v328 = vpop.f32.mrf.mxu0
        %v329 = vadd.f32 %v247, %v328
        %v330 = vpop.f32.mrf.mxu0
        %v331 = vadd.f32 %v247, %v330
        %332 = vmatmul.bf16.gmra.mxu0 %v262
        %v333 = vpop.f32.mrf.mxu0
        %v334 = vadd.f32 %v247, %v333
        %v335 = vpop.f32.mrf.mxu0
        %v336 = vadd.f32 %v247, %v335
        %337 = vdwg.mxu0
        %vm338 = vcmp.ge.f32.partialorder %v324, 0.0
        %vm339 = vcmp.ge.f32.partialorder %v326, 0.0
        %vm340 = vcmp.ge.f32.partialorder %v329, 0.0
        %vm341 = vcmp.ge.f32.partialorder %v331, 0.0
        %vm342 = vcmp.ge.f32.partialorder %v334, 0.0
        %vm343 = vcmp.ge.f32.partialorder %v336, 0.0
        %v344 = vld [vmem:[#allocation7 + $0x1] sm:$0x1]
        %v345 = vperm.slane %v344, 0
        %v346 = vmul.f32 %v345, %v324
        %v347 = vmul.f32 %v345, %v326
        %v348 = vmul.f32 %v345, %v329
        %v349 = vmul.f32 %v345, %v331
        %v350 = vmul.f32 %v345, %v334
        %v351 = vmul.f32 %v345, %v336
        %v352 = vsel %vm338, %v324, %v346
        %v353 = vsel %vm339, %v326, %v347
        %v354 = vsel %vm340, %v329, %v348
        %v355 = vsel %vm341, %v331, %v349
        %v356 = vsel %vm342, %v334, %v350
        %v357 = vsel %vm343, %v336, %v351
        %v358 = vpack.c.bf16 %v352, %v352
        %v359 = vpack.c.bf16 %v353, %v353
        %v360 = vpack.c.bf16 %v354, %v354
        %v361 = vpack.c.bf16 %v355, %v355
        %v362 = vpack.c.bf16 %v356, %v356
        %v363 = vpack.c.bf16 %v357, %v357
        %364 = vst [vmem:[%s221] sm:$0xf] %v358
        %365 = vst [vmem:[%s221 + $0x4] sm:$0xf] %v359
        %366 = vst [vmem:[%s221 + $0x8] sm:$0xf] %v360
        %367 = vst [vmem:[%s221 + $0xc] sm:$0xf] %v361
        %368 = vst [vmem:[%s221 + $0x10] sm:$0xf] %v362
        %369 = vst [vmem:[%s221 + $0x14] sm:$0xf] %v363
        %s370 = sand.u32 %s97, 1
        %s371 = scalar_lea.sflag [#allocation4], %s370
        %s372 = sand.u32 %s97, 1
        %s373 = smul.addr %s372, 24
        %s374 = scalar_lea.vmem [#allocation8], %s373
        // Predicated region
        $region45: #{tpu_custom_call.1} parent=31 // pred_check
          %p375 = pneg %p107
        $region46: #{tpu_custom_call.1} parent=31 // pred_check_branch
          %377 = sbr.rel (%p375) target = $region48
        $region47: #{tpu_custom_call.1} parent=31 // pred_region
          %s378 = smul.u32 6, %s21
          %380 = vsyncadd %s371, 0
          %s381 = smul.addr %s378, 4
          %s382 = scalar_lea.hbm %s3, %s381
          %s383 = sshll.u32 %s374, 4
          %s384 = int_to_ptr.vmem [resolvable:$true] %s383
          %s385 = sshll.u32 %s382, 4
          %s386 = int_to_ptr.hbm [resolvable:$true] %s385
          %391 = dma.vmem_to_hbm [thread:$0]  %s384, 384, %s386, %s371, 64, 64, 4
        $region48: #{tpu_custom_call.1} parent=31 // pred_fallthru
          _
      $region32: #{tpu_custom_call.1} parent=5 // pred_fallthru
        _
      %p392 = scmp.le.s32.totalorder 2, %s16
      // Predicated region
      $region49: #{tpu_custom_call.1} parent=5 // pred_check
        %p393 = pneg %p392
      $region50: #{tpu_custom_call.1} parent=5 // pred_check_branch
        %395 = sbr.rel (%p393) target = $region52
      $region51: #{tpu_custom_call.1} parent=5 // pred_region
        %s396 = ssub.s32 %s16, 2
        // Predicated region
        $region53: #{tpu_custom_call.1} parent=51 // pred_check
          %p397 = pneg %p113
        $region54: #{tpu_custom_call.1} parent=51 // pred_check_branch
          %399 = sbr.rel (%p397) target = $region56
        $region55: #{tpu_custom_call.1} parent=51 // pred_region
          %s400 = sand.u32 %s98, 1
          %s401 = scalar_lea.sflag [#allocation4], %s400
          %s402 = sand.u32 %s98, 1
          %s403 = smul.addr %s402, 24
          %s404 = scalar_lea.vmem [#allocation8], %s403
          %406 = dma.done %s401, 384
        $region56: #{tpu_custom_call.1} parent=51 // pred_fallthru
          _
      $region52: #{tpu_custom_call.1} parent=5 // pred_fallthru
        _
    $region6: #{tpu_custom_call.1} parent=1 // loop_footer
      %s20 = sadd.s32 1, %s16
    $region7: #{tpu_custom_call.1} parent=1 // loop_footer_branch
      %15 = sbr.rel target = $region3
    $region8: #{tpu_custom_call.1} parent=1 // loop_exit
      _
    %407 = vsyncpa [#allocation3], 1
    %s408 = scalar_lea.sflag [#allocation3], 1
    %409 = vsyncpa %s408, 1
    %410 = vsyncpa [#allocation6], 1
    %411 = vsyncpa [#allocation4], 1
    %s412 = scalar_lea.sflag [#allocation4], 1
    %413 = vsyncpa %s412, 1

</llo_original>
